<compile_context>
chip_gen: v6e
topology: v6e:2x2x1
jax: 0.10.0
libtpu: 0.0.40
codegen_flags: <defaults>
</compile_context>

<pallas_src>
import jax
import jax.numpy as jnp
from jax.experimental import pallas as pl
from jax.experimental.pallas import tpu as pltpu


def _round_up(n, k):
    return ((n + k - 1) // k) * k


# ----------------------------------------------------------------------------
# Pallas kernel A: fused inverse VFT.
#   out[b, o, n] = sum_m cr[b, o, m] * vr[b, m, n] - ci[b, o, m] * vi[b, m, n]
# i.e. Re( V_inv @ coeffs ) in transposed (channel-major, point-on-lanes) layout.
# The "/ N * 2" scale is pre-folded into cr/ci by the wrapper.
# ----------------------------------------------------------------------------
def _ivft_kernel(cr_ref, ci_ref, vr_ref, vi_ref, o_ref):
    cr = cr_ref[0]                      # [Cout, Mtot]
    ci = ci_ref[0]
    vr = vr_ref[0]                      # [Mtot, TN]
    vi = vi_ref[0]
    acc = jnp.dot(cr, vr, preferred_element_type=jnp.float32)
    acc = acc - jnp.dot(ci, vi, preferred_element_type=jnp.float32)
    o_ref[0] = acc.astype(o_ref.dtype)


def _inverse_vft_real(cr, ci, vinvT_re, vinvT_im):
    """cr/ci: [B, Cout, Mtot]; vinvT_*: [B, Mtot, N]  ->  [B, Cout, N] (real)."""
    B, Cout, Mtot = cr.shape
    N = vinvT_re.shape[-1]

    TN = min(512, _round_up(N, 128))          # lane-dense tile, multiple of 128
    Npad = _round_up(N, TN)
    if Npad != N:
        pad = ((0, 0), (0, 0), (0, Npad - N))
        vinvT_re = jnp.pad(vinvT_re, pad)
        vinvT_im = jnp.pad(vinvT_im, pad)

    out = pl.pallas_call(
        _ivft_kernel,
        out_shape=jax.ShapeDtypeStruct((B, Cout, Npad), jnp.float32),
        grid_spec=pltpu.PrefetchScalarGridSpec(
            num_scalar_prefetch=0,
            grid=(B, Npad // TN),
            in_specs=[
                pl.BlockSpec((1, Cout, Mtot), lambda b, j: (b, 0, 0)),
                pl.BlockSpec((1, Cout, Mtot), lambda b, j: (b, 0, 0)),
                pl.BlockSpec((1, Mtot, TN), lambda b, j: (b, 0, j)),
                pl.BlockSpec((1, Mtot, TN), lambda b, j: (b, 0, j)),
            ],
            out_specs=pl.BlockSpec((1, Cout, TN), lambda b, j: (b, 0, j)),
        ),
        compiler_params=pltpu.CompilerParams(
            dimension_semantics=("parallel", "parallel")),
    )(cr, ci, vinvT_re, vinvT_im)
    return out[:, :, :N]


# ----------------------------------------------------------------------------
# Pallas kernel B: per-mode complex channel mixing (compl_mul2d), both spectral
# corner blocks fused.  out[b, o, s] = sum_i a[b, i, s] * w[i, o, s]   (complex)
# ----------------------------------------------------------------------------
def _cmul_kernel(ar_ref, ai_ref, wr_ref, wi_ref, or_ref, oi_ref):
    cin = wr_ref.shape[0]
    ar = ar_ref[0]                      # [Cin, S]
    ai = ai_ref[0]
    wr = wr_ref[...]                    # [Cin, Cout, S]
    wi = wi_ref[...]
    out_r = jnp.zeros(or_ref.shape[1:], jnp.float32)
    out_i = jnp.zeros(oi_ref.shape[1:], jnp.float32)
    for i in range(cin):                # Cin is tiny & static -> unrolled
        ar_i = ar[i:i + 1, :]           # [1, S] (sublane-broadcast over Cout)
        ai_i = ai[i:i + 1, :]
        out_r = out_r + ar_i * wr[i] - ai_i * wi[i]
        out_i = out_i + ar_i * wi[i] + ai_i * wr[i]
    or_ref[0] = out_r
    oi_ref[0] = out_i


def _compl_mul_modes(ar, ai, wr, wi):
    """ar/ai: [B, Cin, S]; wr/wi: [Cin, Cout, S]  ->  (out_re, out_im) [B, Cout, S]."""
    B, Cin, S = ar.shape
    Cout = wr.shape[1]
    return pl.pallas_call(
        _cmul_kernel,
        out_shape=(jax.ShapeDtypeStruct((B, Cout, S), jnp.float32),
                   jax.ShapeDtypeStruct((B, Cout, S), jnp.float32)),
        grid_spec=pltpu.PrefetchScalarGridSpec(
            num_scalar_prefetch=0,
            grid=(B,),
            in_specs=[
                pl.BlockSpec((1, Cin, S), lambda b: (b, 0, 0)),
                pl.BlockSpec((1, Cin, S), lambda b: (b, 0, 0)),
                pl.BlockSpec((Cin, Cout, S), lambda b: (0, 0, 0)),
                pl.BlockSpec((Cin, Cout, S), lambda b: (0, 0, 0)),
            ],
            out_specs=[
                pl.BlockSpec((1, Cout, S), lambda b: (b, 0, 0)),
                pl.BlockSpec((1, Cout, S), lambda b: (b, 0, 0)),
            ],
        ),
        compiler_params=pltpu.CompilerParams(dimension_semantics=("parallel",)),
    )(ar, ai, wr, wi)


# ----------------------------------------------------------------------------
# VFT transformer (Vandermonde Fourier transform for scattered 2-D points).
# Mode ordering matches SpectralConv2d_last's flattened-coefficient layout
# (first 2*m^2 coeffs from out_ft, then the conjugate-extension block).
# V_fwd = exp(-i*phase), V_inv = conj(V_fwd)^T  =>  (V_inv)^T = exp(+i*phase).
# ----------------------------------------------------------------------------
class VFT:
    def __init__(self, x_pos, y_pos, modes):
        self.batch_size, self.num_points = x_pos.shape
        self.modes = int(modes)
        m = self.modes
        p = jnp.arange(2 * m)
        kx_head = jnp.where(p < m, p, p - 2 * m).astype(jnp.float32)  # 0..m-1, -m..-1
        ky_head = jnp.arange(m, dtype=jnp.float32)                    # 0..m-1
        kx1 = jnp.repeat(kx_head, m)                                  # [2*m*m]
        ky1 = jnp.tile(ky_head, 2 * m)
        # conjugate-extension block: entry l mirrors flat index (2*m*m - 1 - l)
        j = 2 * m * m - 1 - jnp.arange(2 * m * m - 2 * m)
        kx = jnp.concatenate([kx1, -kx1[j]])
        ky = jnp.concatenate([ky1, -ky1[j]])                          # [Mtot]
        two_pi = 2.0 * jnp.pi
        phase = (kx[None, :, None] * (two_pi * x_pos)[:, None, :]
                 + ky[None, :, None] * (two_pi * y_pos)[:, None, :])  # [B, Mtot, N]
        self.vinvT_re = jnp.cos(phase).astype(jnp.float32)
        self.vinvT_im = jnp.sin(phase).astype(jnp.float32)

    def inverse_real(self, cr, ci):
        """Fused: Re(bmm(V_inv, coeffs)) in [B, Cout, N] layout (Pallas kernel A)."""
        return _inverse_vft_real(cr, ci, self.vinvT_re, self.vinvT_im)


# ----------------------------------------------------------------------------
# SpectralConv2d_last forward.
# ----------------------------------------------------------------------------
def spectral_conv2d_last_forward(x, params, transformer):
    """x: [B, Cin, H, W] real  ->  [B, Cout, N_points] real."""
    w1r, w1i = params["weights1_re"], params["weights1_im"]
    w2r, w2i = params["weights2_re"], params["weights2_im"]
    Cin, Cout, m1, m2 = w1r.shape
    B = x.shape[0]

    # TODO(synk): FFT butterflies have no clean Pallas equivalent; rfft2 is left
    # to XLA's native TPU FFT op (glue).
    x_ft = jnp.fft.rfft2(x)                                     # [B, Cin, H, W//2+1]
    a = jnp.concatenate([x_ft[:, :, :m1, :m2],
                         x_ft[:, :, -m1:, :m2]], axis=2)        # [B, Cin, 2*m1, m2]
    S = 2 * m1 * m2
    ar = jnp.real(a).reshape(B, Cin, S).astype(jnp.float32)
    ai = jnp.imag(a).reshape(B, Cin, S).astype(jnp.float32)
    wr = jnp.concatenate([w1r, w2r], axis=2).reshape(Cin, Cout, S)
    wi = jnp.concatenate([w1i, w2i], axis=2).reshape(Cin, Cout, S)

    # compl_mul2d (both corner blocks) — Pallas kernel B.
    br, bi = _compl_mul_modes(ar, ai, wr, wi)                   # [B, Cout, S]

    # Assemble out_ft [B, Cout, 2*m1, m1] and flatten (zeros where modes2 < modes1).
    br = br.reshape(B, Cout, 2 * m1, m2)
    bi = bi.reshape(B, Cout, 2 * m1, m2)
    if m2 < m1:
        pad = ((0, 0), (0, 0), (0, 0), (0, m1 - m2))
        br = jnp.pad(br, pad)
        bi = jnp.pad(bi, pad)
    Sf = 2 * m1 * m1
    br = br.reshape(B, Cout, Sf)
    bi = bi.reshape(B, Cout, Sf)

    # Conjugate extension: x_ft[..., 2*m1:].flip(-1, -2).conj(), then concat.
    c2r = jnp.flip(br[..., 2 * m1:], axis=(-2, -1))
    c2i = -jnp.flip(bi[..., 2 * m1:], axis=(-2, -1))
    cr = jnp.concatenate([br, c2r], axis=-1)                    # [B, Cout, Mtot]
    ci = jnp.concatenate([bi, c2i], axis=-1)

    # Fold the final "x / x.size(-1) * 2" into the (tiny) coefficient tensor.
    scale = 2.0 / transformer.num_points
    cr = cr * scale
    ci = ci * scale

    # transformer.inverse + permute(0,2,1) + "/N*2" + .real, fused — Pallas kernel A.
    return transformer.inverse_real(cr, ci)                     # [B, Cout, N]


# ----------------------------------------------------------------------------
# Pure-JAX reference mirroring the PyTorch code line-by-line (for self-check).
# ----------------------------------------------------------------------------
def _reference_forward(x, params, transformer):
    w1 = params["weights1_re"] + 1j * params["weights1_im"]
    w2 = params["weights2_re"] + 1j * params["weights2_im"]
    Cin, Cout, m1, m2 = w1.shape
    B = x.shape[0]
    x_ft = jnp.fft.rfft2(x)
    out1 = jnp.einsum('bixy,ioxy->boxy', x_ft[:, :, :m1, :m2], w1,
                      precision='highest')
    out2 = jnp.einsum('bixy,ioxy->boxy', x_ft[:, :, -m1:, :m2], w2,
                      precision='highest')
    out_ft = jnp.zeros((B, Cout, 2 * m1, m1), jnp.complex64)
    out_ft = out_ft.at[:, :, :m1, :m2].set(out1)
    out_ft = out_ft.at[:, :, -m1:, :m2].set(out2)
    xf = out_ft.reshape(B, Cout, 2 * m1 * m1)
    xf2 = jnp.conj(jnp.flip(xf[..., 2 * m1:], axis=(-1, -2)))
    xf = jnp.concatenate([xf, xf2], axis=-1)
    xf = jnp.transpose(xf, (0, 2, 1))                           # [B, Mtot, Cout]
    v_inv = jnp.transpose(transformer.vinvT_re + 1j * transformer.vinvT_im,
                          (0, 2, 1))                            # [B, N, Mtot]
    y = jnp.einsum('bnm,bmo->bno', v_inv, xf, precision='highest')
    y = jnp.transpose(y, (0, 2, 1))                             # [B, Cout, N]
    y = y / y.shape[-1] * 2
    return jnp.real(y)


# ----------------------------------------------------------------------------
# Deterministic parameter init (matches torch.rand(..., dtype=torch.cfloat)*scale).
# ----------------------------------------------------------------------------
def init_params(key, in_channels, out_channels, modes1, modes2):
    scale = 1.0 / (in_channels * out_channels)
    k1, k2, k3, k4 = jax.random.split(key, 4)
    shape = (in_channels, out_channels, modes1, modes2)
    return dict(
        weights1_re=scale * jax.random.uniform(k1, shape, jnp.float32),
        weights1_im=scale * jax.random.uniform(k2, shape, jnp.float32),
        weights2_re=scale * jax.random.uniform(k3, shape, jnp.float32),
        weights2_im=scale * jax.random.uniform(k4, shape, jnp.float32),
    )


if __name__ == "__main__":
    B, C, H, W = 2, 4, 16, 16
    MODES = 6            # modes1 == modes2
    N_POINTS = 972       # Elasticity point-cloud size

    key = jax.random.PRNGKey(0)
    k_x, k_p, k_px, k_py = jax.random.split(key, 4)

    x = jax.random.normal(k_x, (B, C, H, W), jnp.float32)
    params = init_params(k_p, C, C, MODES, MODES)
    x_pos = jax.random.uniform(k_px, (B, N_POINTS), jnp.float32)
    y_pos = jax.random.uniform(k_py, (B, N_POINTS), jnp.float32)
    transformer = VFT(x_pos, y_pos, MODES)

    out = spectral_conv2d_last_forward(x, params, transformer)
    out = jax.block_until_ready(out)

    assert out.shape == (B, C, N_POINTS), out.shape
    assert bool(jnp.all(jnp.isfinite(out)))

    ref = _reference_forward(x, params, transformer)
    err = float(jnp.max(jnp.abs(out - ref)))
    assert err < 2e-3, f"max abs err vs reference: {err}"

    print("KERNEL_OK")
</pallas_src>

<mosaic_0001>
module attributes {stable_mosaic.version = 11 : i64} {
  func.func @_cmul_kernel(%arg0: i32, %arg1: memref<1x4x72xf32, #tpu.memory_space<vmem>>, %arg2: memref<1x4x72xf32, #tpu.memory_space<vmem>>, %arg3: memref<4x4x72xf32, #tpu.memory_space<vmem>>, %arg4: memref<4x4x72xf32, #tpu.memory_space<vmem>>, %arg5: memref<1x4x72xf32, #tpu.memory_space<vmem>>, %arg6: memref<1x4x72xf32, #tpu.memory_space<vmem>>) attributes {dimension_semantics = [#tpu.dimension_semantics<parallel>], iteration_bounds = array<i64: 2>, scalar_prefetch = 0 : i64, scratch_operands = 0 : i64, tpu.core_type = #tpu.core_type<tc>, window_params = [{transform_indices = @transform_0, window_bounds = array<i64: 1, 4, 72>}, {transform_indices = @transform_1, window_bounds = array<i64: 1, 4, 72>}, {pipeline_mode = #tpu.pipeline_mode<synchronous>, transform_indices = @transform_2, window_bounds = array<i64: 4, 4, 72>}, {pipeline_mode = #tpu.pipeline_mode<synchronous>, transform_indices = @transform_3, window_bounds = array<i64: 4, 4, 72>}, {transform_indices = @transform_4, window_bounds = array<i64: 1, 4, 72>}, {transform_indices = @transform_5, window_bounds = array<i64: 1, 4, 72>}]} {
    %c0 = arith.constant 0 : index
    %c0_0 = arith.constant 0 : index
    %c0_1 = arith.constant 0 : index
    %0 = vector.load %arg1[%c0, %c0_0, %c0_1] : memref<1x4x72xf32, #tpu.memory_space<vmem>>, vector<1x4x72xf32>
    %1 = vector.shape_cast %0 : vector<1x4x72xf32> to vector<4x72xf32>
    %c0_2 = arith.constant 0 : index
    %c0_3 = arith.constant 0 : index
    %c0_4 = arith.constant 0 : index
    %2 = vector.load %arg2[%c0_2, %c0_3, %c0_4] : memref<1x4x72xf32, #tpu.memory_space<vmem>>, vector<1x4x72xf32>
    %3 = vector.shape_cast %2 : vector<1x4x72xf32> to vector<4x72xf32>
    %c0_5 = arith.constant 0 : index
    %c0_6 = arith.constant 0 : index
    %c0_7 = arith.constant 0 : index
    %4 = vector.load %arg3[%c0_5, %c0_6, %c0_7] : memref<4x4x72xf32, #tpu.memory_space<vmem>>, vector<4x4x72xf32>
    %c0_8 = arith.constant 0 : index
    %c0_9 = arith.constant 0 : index
    %c0_10 = arith.constant 0 : index
    %5 = vector.load %arg4[%c0_8, %c0_9, %c0_10] : memref<4x4x72xf32, #tpu.memory_space<vmem>>, vector<4x4x72xf32>
    %cst = arith.constant 0.000000e+00 : f32
    %6 = vector.broadcast %cst : f32 to vector<4x72xf32>
    %cst_11 = arith.constant 0.000000e+00 : f32
    %7 = vector.broadcast %cst_11 : f32 to vector<4x72xf32>
    %8 = vector.extract_strided_slice %1 {offsets = [0, 0], sizes = [1, 72], strides = [1, 1]} : vector<4x72xf32> to vector<1x72xf32>
    %9 = vector.extract_strided_slice %3 {offsets = [0, 0], sizes = [1, 72], strides = [1, 1]} : vector<4x72xf32> to vector<1x72xf32>
    %10 = vector.extract_strided_slice %4 {offsets = [0, 0, 0], sizes = [1, 4, 72], strides = [1, 1, 1]} : vector<4x4x72xf32> to vector<1x4x72xf32>
    %11 = vector.shape_cast %10 : vector<1x4x72xf32> to vector<4x72xf32>
    %12 = vector.broadcast %8 : vector<1x72xf32> to vector<4x72xf32>
    %13 = arith.mulf %12, %11 : vector<4x72xf32>
    %14 = arith.addf %6, %13 : vector<4x72xf32>
    %15 = vector.extract_strided_slice %5 {offsets = [0, 0, 0], sizes = [1, 4, 72], strides = [1, 1, 1]} : vector<4x4x72xf32> to vector<1x4x72xf32>
    %16 = vector.shape_cast %15 : vector<1x4x72xf32> to vector<4x72xf32>
    %17 = vector.broadcast %9 : vector<1x72xf32> to vector<4x72xf32>
    %18 = arith.mulf %17, %16 : vector<4x72xf32>
    %19 = arith.subf %14, %18 : vector<4x72xf32>
    %20 = vector.extract_strided_slice %5 {offsets = [0, 0, 0], sizes = [1, 4, 72], strides = [1, 1, 1]} : vector<4x4x72xf32> to vector<1x4x72xf32>
    %21 = vector.shape_cast %20 : vector<1x4x72xf32> to vector<4x72xf32>
    %22 = vector.broadcast %8 : vector<1x72xf32> to vector<4x72xf32>
    %23 = arith.mulf %22, %21 : vector<4x72xf32>
    %24 = arith.addf %7, %23 : vector<4x72xf32>
    %25 = vector.extract_strided_slice %4 {offsets = [0, 0, 0], sizes = [1, 4, 72], strides = [1, 1, 1]} : vector<4x4x72xf32> to vector<1x4x72xf32>
    %26 = vector.shape_cast %25 : vector<1x4x72xf32> to vector<4x72xf32>
    %27 = vector.broadcast %9 : vector<1x72xf32> to vector<4x72xf32>
    %28 = arith.mulf %27, %26 : vector<4x72xf32>
    %29 = arith.addf %24, %28 : vector<4x72xf32>
    %30 = vector.extract_strided_slice %1 {offsets = [1, 0], sizes = [1, 72], strides = [1, 1]} : vector<4x72xf32> to vector<1x72xf32>
    %31 = vector.extract_strided_slice %3 {offsets = [1, 0], sizes = [1, 72], strides = [1, 1]} : vector<4x72xf32> to vector<1x72xf32>
    %32 = vector.extract_strided_slice %4 {offsets = [1, 0, 0], sizes = [1, 4, 72], strides = [1, 1, 1]} : vector<4x4x72xf32> to vector<1x4x72xf32>
    %33 = vector.shape_cast %32 : vector<1x4x72xf32> to vector<4x72xf32>
    %34 = vector.broadcast %30 : vector<1x72xf32> to vector<4x72xf32>
    %35 = arith.mulf %34, %33 : vector<4x72xf32>
    %36 = arith.addf %19, %35 : vector<4x72xf32>
    %37 = vector.extract_strided_slice %5 {offsets = [1, 0, 0], sizes = [1, 4, 72], strides = [1, 1, 1]} : vector<4x4x72xf32> to vector<1x4x72xf32>
    %38 = vector.shape_cast %37 : vector<1x4x72xf32> to vector<4x72xf32>
    %39 = vector.broadcast %31 : vector<1x72xf32> to vector<4x72xf32>
    %40 = arith.mulf %39, %38 : vector<4x72xf32>
    %41 = arith.subf %36, %40 : vector<4x72xf32>
    %42 = vector.extract_strided_slice %5 {offsets = [1, 0, 0], sizes = [1, 4, 72], strides = [1, 1, 1]} : vector<4x4x72xf32> to vector<1x4x72xf32>
    %43 = vector.shape_cast %42 : vector<1x4x72xf32> to vector<4x72xf32>
    %44 = vector.broadcast %30 : vector<1x72xf32> to vector<4x72xf32>
    %45 = arith.mulf %44, %43 : vector<4x72xf32>
    %46 = arith.addf %29, %45 : vector<4x72xf32>
    %47 = vector.extract_strided_slice %4 {offsets = [1, 0, 0], sizes = [1, 4, 72], strides = [1, 1, 1]} : vector<4x4x72xf32> to vector<1x4x72xf32>
    %48 = vector.shape_cast %47 : vector<1x4x72xf32> to vector<4x72xf32>
    %49 = vector.broadcast %31 : vector<1x72xf32> to vector<4x72xf32>
    %50 = arith.mulf %49, %48 : vector<4x72xf32>
    %51 = arith.addf %46, %50 : vector<4x72xf32>
    %52 = vector.extract_strided_slice %1 {offsets = [2, 0], sizes = [1, 72], strides = [1, 1]} : vector<4x72xf32> to vector<1x72xf32>
    %53 = vector.extract_strided_slice %3 {offsets = [2, 0], sizes = [1, 72], strides = [1, 1]} : vector<4x72xf32> to vector<1x72xf32>
    %54 = vector.extract_strided_slice %4 {offsets = [2, 0, 0], sizes = [1, 4, 72], strides = [1, 1, 1]} : vector<4x4x72xf32> to vector<1x4x72xf32>
    %55 = vector.shape_cast %54 : vector<1x4x72xf32> to vector<4x72xf32>
    %56 = vector.broadcast %52 : vector<1x72xf32> to vector<4x72xf32>
    %57 = arith.mulf %56, %55 : vector<4x72xf32>
    %58 = arith.addf %41, %57 : vector<4x72xf32>
    %59 = vector.extract_strided_slice %5 {offsets = [2, 0, 0], sizes = [1, 4, 72], strides = [1, 1, 1]} : vector<4x4x72xf32> to vector<1x4x72xf32>
    %60 = vector.shape_cast %59 : vector<1x4x72xf32> to vector<4x72xf32>
    %61 = vector.broadcast %53 : vector<1x72xf32> to vector<4x72xf32>
    %62 = arith.mulf %61, %60 : vector<4x72xf32>
    %63 = arith.subf %58, %62 : vector<4x72xf32>
    %64 = vector.extract_strided_slice %5 {offsets = [2, 0, 0], sizes = [1, 4, 72], strides = [1, 1, 1]} : vector<4x4x72xf32> to vector<1x4x72xf32>
    %65 = vector.shape_cast %64 : vector<1x4x72xf32> to vector<4x72xf32>
    %66 = vector.broadcast %52 : vector<1x72xf32> to vector<4x72xf32>
    %67 = arith.mulf %66, %65 : vector<4x72xf32>
    %68 = arith.addf %51, %67 : vector<4x72xf32>
    %69 = vector.extract_strided_slice %4 {offsets = [2, 0, 0], sizes = [1, 4, 72], strides = [1, 1, 1]} : vector<4x4x72xf32> to vector<1x4x72xf32>
    %70 = vector.shape_cast %69 : vector<1x4x72xf32> to vector<4x72xf32>
    %71 = vector.broadcast %53 : vector<1x72xf32> to vector<4x72xf32>
    %72 = arith.mulf %71, %70 : vector<4x72xf32>
    %73 = arith.addf %68, %72 : vector<4x72xf32>
    %74 = vector.extract_strided_slice %1 {offsets = [3, 0], sizes = [1, 72], strides = [1, 1]} : vector<4x72xf32> to vector<1x72xf32>
    %75 = vector.extract_strided_slice %3 {offsets = [3, 0], sizes = [1, 72], strides = [1, 1]} : vector<4x72xf32> to vector<1x72xf32>
    %76 = vector.extract_strided_slice %4 {offsets = [3, 0, 0], sizes = [1, 4, 72], strides = [1, 1, 1]} : vector<4x4x72xf32> to vector<1x4x72xf32>
    %77 = vector.shape_cast %76 : vector<1x4x72xf32> to vector<4x72xf32>
    %78 = vector.broadcast %74 : vector<1x72xf32> to vector<4x72xf32>
    %79 = arith.mulf %78, %77 : vector<4x72xf32>
    %80 = arith.addf %63, %79 : vector<4x72xf32>
    %81 = vector.extract_strided_slice %5 {offsets = [3, 0, 0], sizes = [1, 4, 72], strides = [1, 1, 1]} : vector<4x4x72xf32> to vector<1x4x72xf32>
    %82 = vector.shape_cast %81 : vector<1x4x72xf32> to vector<4x72xf32>
    %83 = vector.broadcast %75 : vector<1x72xf32> to vector<4x72xf32>
    %84 = arith.mulf %83, %82 : vector<4x72xf32>
    %85 = arith.subf %80, %84 : vector<4x72xf32>
    %86 = vector.extract_strided_slice %5 {offsets = [3, 0, 0], sizes = [1, 4, 72], strides = [1, 1, 1]} : vector<4x4x72xf32> to vector<1x4x72xf32>
    %87 = vector.shape_cast %86 : vector<1x4x72xf32> to vector<4x72xf32>
    %88 = vector.broadcast %74 : vector<1x72xf32> to vector<4x72xf32>
    %89 = arith.mulf %88, %87 : vector<4x72xf32>
    %90 = arith.addf %73, %89 : vector<4x72xf32>
    %91 = vector.extract_strided_slice %4 {offsets = [3, 0, 0], sizes = [1, 4, 72], strides = [1, 1, 1]} : vector<4x4x72xf32> to vector<1x4x72xf32>
    %92 = vector.shape_cast %91 : vector<1x4x72xf32> to vector<4x72xf32>
    %93 = vector.broadcast %75 : vector<1x72xf32> to vector<4x72xf32>
    %94 = arith.mulf %93, %92 : vector<4x72xf32>
    %95 = arith.addf %90, %94 : vector<4x72xf32>
    %c0_12 = arith.constant 0 : index
    %c0_13 = arith.constant 0 : index
    %c0_14 = arith.constant 0 : index
    %96 = vector.load %arg5[%c0_12, %c0_13, %c0_14] : memref<1x4x72xf32, #tpu.memory_space<vmem>>, vector<1x4x72xf32>
    %97 = vector.shape_cast %96 : vector<1x4x72xf32> to vector<4x72xf32>
    %98 = vector.shape_cast %85 : vector<4x72xf32> to vector<1x4x72xf32>
    tpu.vector_store %arg5[%c0_12, %c0_13, %c0_14], %98 {strides = array<i32>} : memref<1x4x72xf32, #tpu.memory_space<vmem>>, vector<1x4x72xf32>,
    %c0_15 = arith.constant 0 : index
    %c0_16 = arith.constant 0 : index
    %c0_17 = arith.constant 0 : index
    %99 = vector.load %arg6[%c0_15, %c0_16, %c0_17] : memref<1x4x72xf32, #tpu.memory_space<vmem>>, vector<1x4x72xf32>
    %100 = vector.shape_cast %99 : vector<1x4x72xf32> to vector<4x72xf32>
    %101 = vector.shape_cast %95 : vector<4x72xf32> to vector<1x4x72xf32>
    tpu.vector_store %arg6[%c0_15, %c0_16, %c0_17], %101 {strides = array<i32>} : memref<1x4x72xf32, #tpu.memory_space<vmem>>, vector<1x4x72xf32>,
    return
  }
  func.func @transform_0(%arg0: i32) -> (i32, i32, i32) {
    %c0_i32 = arith.constant 0 : i32
    %c0_i32_0 = arith.constant 0 : i32
    %c0_i32_1 = arith.constant 0 : i32
    return %arg0, %c0_i32, %c0_i32_0 : i32, i32, i32
  }
  func.func @transform_1(%arg0: i32) -> (i32, i32, i32) {
    %c0_i32 = arith.constant 0 : i32
    %c0_i32_0 = arith.constant 0 : i32
    %c0_i32_1 = arith.constant 0 : i32
    return %arg0, %c0_i32, %c0_i32_0 : i32, i32, i32
  }
  func.func @transform_2(%arg0: i32) -> (i32, i32, i32) {
    %c0_i32 = arith.constant 0 : i32
    %c0_i32_0 = arith.constant 0 : i32
    %c0_i32_1 = arith.constant 0 : i32
    %c0_i32_2 = arith.constant 0 : i32
    return %c0_i32, %c0_i32_0, %c0_i32_1 : i32, i32, i32
  }
  func.func @transform_3(%arg0: i32) -> (i32, i32, i32) {
    %c0_i32 = arith.constant 0 : i32
    %c0_i32_0 = arith.constant 0 : i32
    %c0_i32_1 = arith.constant 0 : i32
    %c0_i32_2 = arith.constant 0 : i32
    return %c0_i32, %c0_i32_0, %c0_i32_1 : i32, i32, i32
  }
  func.func @transform_4(%arg0: i32) -> (i32, i32, i32) {
    %c0_i32 = arith.constant 0 : i32
    %c0_i32_0 = arith.constant 0 : i32
    %c0_i32_1 = arith.constant 0 : i32
    return %arg0, %c0_i32, %c0_i32_0 : i32, i32, i32
  }
  func.func @transform_5(%arg0: i32) -> (i32, i32, i32) {
    %c0_i32 = arith.constant 0 : i32
    %c0_i32_0 = arith.constant 0 : i32
    %c0_i32_1 = arith.constant 0 : i32
    return %arg0, %c0_i32, %c0_i32_0 : i32, i32, i32
  }
}

</mosaic_0001>

<llo_original>
// kernel: tpu_custom_call.1
$region0: #{tpu_custom_call.1}
  #allocation0 [shape = 'u32[]', space=smem, size = 0x4, offset = 0x4, fixed_abs, tag = 'smem constant byte address 0x4 - core index']
  #allocation1 [shape = 'u32[144,128]{1,0:T(1,128)}', space=vmem, size = 0x12000, scoped, tag = 'internal scratch']
  %s0 = inlined_call_operand.hbm [shape: f32[2,4,72], index: 0, kind: input, shape index: {}]
  %s1 = inlined_call_operand.hbm [shape: f32[2,4,72], index: 1, kind: input, shape index: {}]
  %s2 = inlined_call_operand.hbm [shape: f32[4,4,72], index: 2, kind: input, shape index: {}]
  %s3 = inlined_call_operand.hbm [shape: f32[4,4,72], index: 3, kind: input, shape index: {}]
  %s4 = inlined_call_operand.hbm [shape: f32[2,4,72], index: 4, kind: output, shape index: {0}]
  %s5 = inlined_call_operand.hbm [shape: f32[2,4,72], index: 5, kind: output, shape index: {1}]
  %6 = xla_tuple %s4, %s5
  %s7 = sld [smem:[#allocation0]]
  $region73: #{tpu_custom_call.1} parent=0
    _
  %s9 = ssub.s32 1, %s7
  %s10 = scalar_select 0, %s9, %s7
  $region1: #{tpu_custom_call.1} parent=0
    #allocation2 [shape = 'u8[4096]{0}', space=vmem, size = 0x1000, scoped, tag = 'input window, operand 0']
    #allocation3 [shape = 's32[2]{0}', space=sflag, size = 0x8, scoped, tag = 'scoped memory for tpu_custom_call.1']
    #allocation4 [shape = 's32[2]{0}', space=sflag, size = 0x8, scoped, tag = 'scoped memory for tpu_custom_call.1']
    #allocation5 [shape = 'u8[4096]{0}', space=vmem, size = 0x1000, scoped, tag = 'input window, operand 1']
    #allocation6 [shape = 's32[2]{0}', space=sflag, size = 0x8, scoped, tag = 'scoped memory for tpu_custom_call.1']
    #allocation7 [shape = 'u8[8192]{0}', space=vmem, size = 0x2000, scoped, tag = 'input window, operand 2, single buffered']
    #allocation8 [shape = 'u8[8192]{0}', space=vmem, size = 0x2000, scoped, tag = 'input window, operand 3, single buffered']
    #allocation9 [shape = 's32[1]{0}', space=sflag, size = 0x4, scoped, tag = 'scoped memory for tpu_custom_call.1']
    #allocation10 [shape = 'u8[4096]{0}', space=vmem, size = 0x1000, scoped, tag = 'output window, operand 0']
    #allocation11 [shape = 'u8[4096]{0}', space=vmem, size = 0x1000, scoped, tag = 'output window, operand 1']
    #allocation12 [shape = 's32[2]{0}', space=sflag, size = 0x8, scoped, tag = 'scoped memory for tpu_custom_call.1']
    %11 = vsyncpa [#allocation3], 0
    %s12 = scalar_lea.sflag [#allocation3], 1
    %13 = vsyncpa %s12, 0
    %14 = vsyncpa [#allocation6], 0
    %s15 = scalar_lea.sflag [#allocation6], 1
    %16 = vsyncpa %s15, 0
    %17 = vsyncpa [#allocation9], 0
    %18 = vsyncpa [#allocation4], 0
    %s19 = scalar_lea.sflag [#allocation4], 1
    %20 = vsyncpa %s19, 0
    %21 = vsyncpa [#allocation12], 0
    %s22 = scalar_lea.sflag [#allocation12], 1
    %23 = vsyncpa %s22, 0
    loop: start=0, step=1, limit=4
    $region2: #{tpu_custom_call.1} parent=1 // loop_pre_header
      _
    $region3: #{tpu_custom_call.1} parent=1 // loop_header
      %s25 = sphi 0, %s29
      %p26 = scmp.ge.s32.totalorder %s25, 4
      %s35 = sphi 0, %s37
      %s38 = sphi 0, %s35
      %s39 = sphi 0, %s38
      %s55 = sphi 0, %s39
      %s61 = sphi 0, %s63
      %s64 = sphi 0, %s61
      %s65 = sphi 0, %s64
      %s81 = sphi 0, %s65
      %s85 = sphi 0, %s85
      %s87 = sphi 0, %s85
      %s88 = sphi 0, %s87
      %s102 = sphi 0, %s88
      %s106 = sphi 0, %s106
      %s108 = sphi 0, %s106
      %s109 = sphi 0, %s108
      %s123 = sphi 0, %s109
      %s129 = sphi 0, %s131
      %s132 = sphi 0, %s129
      %s133 = sphi 0, %s132
      %s149 = sphi 0, %s133
      %s155 = sphi 0, %s157
      %s158 = sphi 0, %s155
      %s159 = sphi 0, %s158
      %s175 = sphi 0, %s159
    $region4: #{tpu_custom_call.1} parent=1 // loop_header_branch
      %28 = sbr.rel (%p26) target = $region8
    $region5: #{tpu_custom_call.1} parent=1 // loop_body
      %s30 = ssub.s32 %s25, 1
      %s31 = ssub.s32 %s25, 2
      %s32 = sadd.s32 %s25, 1
      %s33 = ssub.s32 %s25, %s32
      %p34 = scmp.eq.s32.totalorder %s33, 0
      %s36 = sadd.s32 %s35, 1
      %s37 = scalar_select %p34, %s35, %s36
      %p40 = pneg %p34
      %p41 = scmp.eq.s32.totalorder %s25, 1
      %p42 = por %p40, %p41
      %p43 = scmp.ne.s32.totalorder %s35, %s38
      %p44 = scmp.eq.s32.totalorder %s25, 0
      %p45 = por %p43, %p44
      %p46 = scmp.ne.s32.totalorder %s35, %s38
      %p47 = scmp.eq.s32.totalorder %s30, 1
      %p48 = por %p46, %p47
      %p49 = scmp.ne.s32.totalorder %s38, %s39
      %p50 = scmp.eq.s32.totalorder %s30, 0
      %p51 = por %p49, %p50
      %p52 = scmp.ne.s32.totalorder %s38, %s39
      %p53 = scmp.eq.s32.totalorder %s31, 1
      %p54 = por %p52, %p53
      %p56 = scmp.ne.s32.totalorder %s39, %s55
      %p57 = scmp.eq.s32.totalorder %s31, 0
      %p58 = por %p56, %p57
      %s59 = ssub.s32 %s25, %s32
      %p60 = scmp.eq.s32.totalorder %s59, 0
      %s62 = sadd.s32 %s61, 1
      %s63 = scalar_select %p60, %s61, %s62
      %p66 = pneg %p60
      %p67 = scmp.eq.s32.totalorder %s25, 1
      %p68 = por %p66, %p67
      %p69 = scmp.ne.s32.totalorder %s61, %s64
      %p70 = scmp.eq.s32.totalorder %s25, 0
      %p71 = por %p69, %p70
      %p72 = scmp.ne.s32.totalorder %s61, %s64
      %p73 = scmp.eq.s32.totalorder %s30, 1
      %p74 = por %p72, %p73
      %p75 = scmp.ne.s32.totalorder %s64, %s65
      %p76 = scmp.eq.s32.totalorder %s30, 0
      %p77 = por %p75, %p76
      %p78 = scmp.ne.s32.totalorder %s64, %s65
      %p79 = scmp.eq.s32.totalorder %s31, 1
      %p80 = por %p78, %p79
      %p82 = scmp.ne.s32.totalorder %s65, %s81
      %p83 = scmp.eq.s32.totalorder %s31, 0
      %p84 = por %p82, %p83
      %s86 = sadd.s32 %s85, 1
      %p89 = scmp.eq.s32.totalorder %s25, 1
      %p90 = scmp.ne.s32.totalorder %s85, %s87
      %p91 = scmp.eq.s32.totalorder %s25, 0
      %p92 = por %p90, %p91
      %p93 = scmp.ne.s32.totalorder %s85, %s87
      %p94 = scmp.eq.s32.totalorder %s30, 1
      %p95 = por %p93, %p94
      %p96 = scmp.ne.s32.totalorder %s87, %s88
      %p97 = scmp.eq.s32.totalorder %s30, 0
      %p98 = por %p96, %p97
      %p99 = scmp.ne.s32.totalorder %s87, %s88
      %p100 = scmp.eq.s32.totalorder %s31, 1
      %p101 = por %p99, %p100
      %p103 = scmp.ne.s32.totalorder %s88, %s102
      %p104 = scmp.eq.s32.totalorder %s31, 0
      %p105 = por %p103, %p104
      %s107 = sadd.s32 %s106, 1
      %p110 = scmp.eq.s32.totalorder %s25, 1
      %p111 = scmp.ne.s32.totalorder %s106, %s108
      %p112 = scmp.eq.s32.totalorder %s25, 0
      %p113 = por %p111, %p112
      %p114 = scmp.ne.s32.totalorder %s106, %s108
      %p115 = scmp.eq.s32.totalorder %s30, 1
      %p116 = por %p114, %p115
      %p117 = scmp.ne.s32.totalorder %s108, %s109
      %p118 = scmp.eq.s32.totalorder %s30, 0
      %p119 = por %p117, %p118
      %p120 = scmp.ne.s32.totalorder %s108, %s109
      %p121 = scmp.eq.s32.totalorder %s31, 1
      %p122 = por %p120, %p121
      %p124 = scmp.ne.s32.totalorder %s109, %s123
      %p125 = scmp.eq.s32.totalorder %s31, 0
      %p126 = por %p124, %p125
      %s127 = ssub.s32 %s25, %s32
      %p128 = scmp.eq.s32.totalorder %s127, 0
      %s130 = sadd.s32 %s129, 1
      %s131 = scalar_select %p128, %s129, %s130
      %p134 = pneg %p128
      %p135 = scmp.eq.s32.totalorder %s25, 1
      %p136 = por %p134, %p135
      %p137 = scmp.ne.s32.totalorder %s129, %s132
      %p138 = scmp.eq.s32.totalorder %s25, 0
      %p139 = por %p137, %p138
      %p140 = scmp.ne.s32.totalorder %s129, %s132
      %p141 = scmp.eq.s32.totalorder %s30, 1
      %p142 = por %p140, %p141
      %p143 = scmp.ne.s32.totalorder %s132, %s133
      %p144 = scmp.eq.s32.totalorder %s30, 0
      %p145 = por %p143, %p144
      %p146 = scmp.ne.s32.totalorder %s132, %s133
      %p147 = scmp.eq.s32.totalorder %s31, 1
      %p148 = por %p146, %p147
      %p150 = scmp.ne.s32.totalorder %s133, %s149
      %p151 = scmp.eq.s32.totalorder %s31, 0
      %p152 = por %p150, %p151
      %s153 = ssub.s32 %s25, %s32
      %p154 = scmp.eq.s32.totalorder %s153, 0
      %s156 = sadd.s32 %s155, 1
      %s157 = scalar_select %p154, %s155, %s156
      %p160 = pneg %p154
      %p161 = scmp.eq.s32.totalorder %s25, 1
      %p162 = por %p160, %p161
      %p163 = scmp.ne.s32.totalorder %s155, %s158
      %p164 = scmp.eq.s32.totalorder %s25, 0
      %p165 = por %p163, %p164
      %p166 = scmp.ne.s32.totalorder %s155, %s158
      %p167 = scmp.eq.s32.totalorder %s30, 1
      %p168 = por %p166, %p167
      %p169 = scmp.ne.s32.totalorder %s158, %s159
      %p170 = scmp.eq.s32.totalorder %s30, 0
      %p171 = por %p169, %p170
      %p172 = scmp.ne.s32.totalorder %s158, %s159
      %p173 = scmp.eq.s32.totalorder %s31, 1
      %p174 = por %p172, %p173
      %p176 = scmp.ne.s32.totalorder %s159, %s175
      %p177 = scmp.eq.s32.totalorder %s31, 0
      %p178 = por %p176, %p177
      %p179 = scmp.le.s32.totalorder 1, %s25
      %p180 = scmp.lt.s32.totalorder %s25, 3
      %p181 = pnand %p179, %p180
      %p182 = pneg %p181
      // Predicated region
      $region9: #{tpu_custom_call.1} parent=5 // pred_check
        _
      $region10: #{tpu_custom_call.1} parent=5 // pred_check_branch
        %184 = sbr.rel (%p181) target = $region12
      $region11: #{tpu_custom_call.1} parent=5 // pred_region
        %s185 = ssub.s32 %s25, 1
        // Predicated region
        $region13: #{tpu_custom_call.1} parent=11 // pred_check
          %p186 = pneg %p98
        $region14: #{tpu_custom_call.1} parent=11 // pred_check_branch
          %188 = sbr.rel (%p186) target = $region16
        $region15: #{tpu_custom_call.1} parent=11 // pred_region
          %s190 = ssub.s32 256, 256
          %191 = vsyncadd [#allocation6], %s190
          %s192 = sshll.u32 [#allocation7], 4
          %s193 = int_to_ptr.vmem [resolvable:$true] %s192
          %198 = dma.hbm_to_vmem [thread:$0]  %s2, 256, %s193, [#allocation6], 64, 64, 4
        $region16: #{tpu_custom_call.1} parent=11 // pred_fallthru
          _
        // Predicated region
        $region17: #{tpu_custom_call.1} parent=11 // pred_check
          %p199 = pneg %p119
        $region18: #{tpu_custom_call.1} parent=11 // pred_check_branch
          %201 = sbr.rel (%p199) target = $region20
        $region19: #{tpu_custom_call.1} parent=11 // pred_region
          %s203 = ssub.s32 256, 256
          %204 = vsyncadd [#allocation9], %s203
          %s205 = sshll.u32 [#allocation8], 4
          %s206 = int_to_ptr.vmem [resolvable:$true] %s205
          %211 = dma.hbm_to_vmem [thread:$0]  %s3, 256, %s206, [#allocation9], 64, 64, 4
        $region20: #{tpu_custom_call.1} parent=11 // pred_fallthru
          _
      $region12: #{tpu_custom_call.1} parent=5 // pred_fallthru
        _
      %p212 = scmp.lt.s32.totalorder %s25, 2
      // Predicated region
      $region21: #{tpu_custom_call.1} parent=5 // pred_check
        %p213 = pneg %p212
      $region22: #{tpu_custom_call.1} parent=5 // pred_check_branch
        %215 = sbr.rel (%p213) target = $region24
      $region23: #{tpu_custom_call.1} parent=5 // pred_region
        // Predicated region
        $region25: #{tpu_custom_call.1} parent=23 // pred_check
          %p216 = pneg %p45
        $region26: #{tpu_custom_call.1} parent=23 // pred_check_branch
          %218 = sbr.rel (%p216) target = $region28
        $region27: #{tpu_custom_call.1} parent=23 // pred_region
          %s219 = sand.u32 %s35, 1
          %s220 = scalar_lea.sflag [#allocation3], %s219
          %s221 = sand.u32 %s35, 1
          %s222 = smul.addr %s221, 4
          %s223 = scalar_lea.vmem [#allocation2], %s222
          %s225 = ssub.s32 64, 64
          %226 = vsyncadd %s220, %s225
          %s227 = smul.addr %s25, 64
          %s228 = scalar_lea.hbm %s0, %s227
          %s230 = sshll.u32 %s223, 4
          %s231 = int_to_ptr.vmem [resolvable:$true] %s230
          %233 = dma.hbm_to_vmem [thread:$0]  %s228, 64, %s231, %s220
        $region28: #{tpu_custom_call.1} parent=23 // pred_fallthru
          _
        // Predicated region
        $region29: #{tpu_custom_call.1} parent=23 // pred_check
          %p234 = pneg %p71
        $region30: #{tpu_custom_call.1} parent=23 // pred_check_branch
          %236 = sbr.rel (%p234) target = $region32
        $region31: #{tpu_custom_call.1} parent=23 // pred_region
          %s237 = sand.u32 %s25, 1
          %s238 = scalar_lea.sflag [#allocation6], %s237
          %s239 = sand.u32 %s61, 1
          %s240 = smul.addr %s239, 4
          %s241 = scalar_lea.vmem [#allocation5], %s240
          %s243 = ssub.s32 64, 64
          %244 = vsyncadd %s238, %s243
          %s245 = smul.addr %s25, 64
          %s246 = scalar_lea.hbm %s1, %s245
          %s248 = sshll.u32 %s241, 4
          %s249 = int_to_ptr.vmem [resolvable:$true] %s248
          %251 = dma.hbm_to_vmem [thread:$0]  %s246, 64, %s249, %s238
        $region32: #{tpu_custom_call.1} parent=23 // pred_fallthru
          _
      $region24: #{tpu_custom_call.1} parent=5 // pred_fallthru
        _
      %p252 = scmp.le.s32.totalorder 1, %s25
      %p253 = scmp.lt.s32.totalorder %s25, 3
      %p254 = pnand %p252, %p253
      %p255 = pneg %p254
      // Predicated region
      $region33: #{tpu_custom_call.1} parent=5 // pred_check
        _
      $region34: #{tpu_custom_call.1} parent=5 // pred_check_branch
        %257 = sbr.rel (%p254) target = $region36
      $region35: #{tpu_custom_call.1} parent=5 // pred_region
        %s258 = ssub.s32 %s25, 1
        %s259 = sand.u32 %s38, 1
        %s260 = scalar_lea.sflag [#allocation3], %s259
        %s261 = sand.u32 %s38, 1
        %s262 = smul.addr %s261, 4
        %s263 = scalar_lea.vmem [#allocation2], %s262
        // Predicated region
        $region37: #{tpu_custom_call.1} parent=35 // pred_check
          %p264 = pneg %p51
        $region38: #{tpu_custom_call.1} parent=35 // pred_check_branch
          %266 = sbr.rel (%p264) target = $region40
        $region39: #{tpu_custom_call.1} parent=35 // pred_region
          %267 = dma.done %s260, 64
        $region40: #{tpu_custom_call.1} parent=35 // pred_fallthru
          _
        %s268 = sand.u32 %s30, 1
        %s269 = scalar_lea.sflag [#allocation6], %s268
        %s270 = sand.u32 %s64, 1
        %s271 = smul.addr %s270, 4
        %s272 = scalar_lea.vmem [#allocation5], %s271
        // Predicated region
        $region41: #{tpu_custom_call.1} parent=35 // pred_check
          %p273 = pneg %p77
        $region42: #{tpu_custom_call.1} parent=35 // pred_check_branch
          %275 = sbr.rel (%p273) target = $region44
        $region43: #{tpu_custom_call.1} parent=35 // pred_region
          %276 = dma.done %s269, 64
        $region44: #{tpu_custom_call.1} parent=35 // pred_fallthru
          _
        // Predicated region
        $region45: #{tpu_custom_call.1} parent=35 // pred_check
          %p277 = pneg %p98
        $region46: #{tpu_custom_call.1} parent=35 // pred_check_branch
          %279 = sbr.rel (%p277) target = $region48
        $region47: #{tpu_custom_call.1} parent=35 // pred_region
          %280 = dma.done [#allocation6], 256
        $region48: #{tpu_custom_call.1} parent=35 // pred_fallthru
          _
        // Predicated region
        $region49: #{tpu_custom_call.1} parent=35 // pred_check
          %p281 = pneg %p119
        $region50: #{tpu_custom_call.1} parent=35 // pred_check_branch
          %283 = sbr.rel (%p281) target = $region52
        $region51: #{tpu_custom_call.1} parent=35 // pred_region
          %284 = dma.done [#allocation9], 256
        $region52: #{tpu_custom_call.1} parent=35 // pred_fallthru
          _
        %s285 = sand.u32 %s38, 1
        %s286 = scalar_lea.sflag [#allocation3], %s285
        %s287 = sand.u32 %s38, 1
        %s288 = smul.addr %s287, 4
        %s289 = scalar_lea.vmem [#allocation2], %s288
        %p290 = pneg %p51
        %p291 = pneg %p48
        %s292 = sand.u32 %s30, 1
        %s293 = scalar_lea.sflag [#allocation6], %s292
        %s294 = sand.u32 %s64, 1
        %s295 = smul.addr %s294, 4
        %s296 = scalar_lea.vmem [#allocation5], %s295
        %p297 = pneg %p77
        %p298 = pneg %p74
        %p299 = pneg %p98
        %p300 = pneg %p95
        %p301 = pneg %p119
        %p302 = pneg %p116
        %p303 = pneg %p145
        %p304 = pneg %p142
        %s305 = sand.u32 %s132, 1
        %s306 = scalar_lea.sflag [#allocation4], %s305
        %s307 = sand.u32 %s132, 1
        %s308 = smul.addr %s307, 4
        %s309 = scalar_lea.vmem [#allocation10], %s308
        %p310 = pneg %p171
        %p311 = pneg %p168
        %s312 = sand.u32 %s158, 1
        %s313 = scalar_lea.sflag [#allocation12], %s312
        %s314 = sand.u32 %s158, 1
        %s315 = smul.addr %s314, 4
        %s316 = scalar_lea.vmem [#allocation11], %s315
        %v317 = vld [vmem:[%s263] sm:$0xf]
        %v318 = vld [vmem:[%s272] sm:$0xf]
        %v319 = vld [vmem:[#allocation7] sm:$0xf]
        %v320 = vld [vmem:[#allocation7 + $0x4] sm:$0xf]
        %v321 = vld [vmem:[#allocation7 + $0x8] sm:$0xf]
        %v322 = vld [vmem:[#allocation7 + $0xc] sm:$0xf]
        %v323 = vld [vmem:[#allocation8] sm:$0xf]
        %v324 = vld [vmem:[#allocation8 + $0x4] sm:$0xf]
        %v325 = vld [vmem:[#allocation8 + $0x8] sm:$0xf]
        %v326 = vld [vmem:[#allocation8 + $0xc] sm:$0xf]
        %v327 = vlaneseq
        %v328 = vshrl.u32 %v327, 7
        %v329 = vsub.s32 0, %v328
        %v330 = vrot.slane %v317, %v329
        %v331 = vmul.f32 %v330, %v319
        %v332 = vadd.f32 %v331, 0.0
        %v333 = vlaneseq
        %v334 = vshrl.u32 %v333, 7
        %v335 = vsub.s32 0, %v334
        %v336 = vrot.slane %v318, %v335
        %v337 = vmul.f32 %v336, %v323
        %v338 = vsub.f32 %v332, %v337
        %v339 = vmul.f32 %v330, %v323
        %v340 = vadd.f32 %v339, 0.0
        %v341 = vmul.f32 %v336, %v319
        %v342 = vadd.f32 %v340, %v341
        %v343 = vlaneseq
        %v344 = vshrl.u32 %v343, 7
        %v345 = vsub.s32 1, %v344
        %v346 = vrot.slane %v317, %v345
        %v347 = vmul.f32 %v346, %v320
        %v348 = vadd.f32 %v338, %v347
        %v349 = vlaneseq
        %v350 = vshrl.u32 %v349, 7
        %v351 = vsub.s32 1, %v350
        %v352 = vrot.slane %v318, %v351
        %v353 = vmul.f32 %v352, %v324
        %v354 = vsub.f32 %v348, %v353
        %v355 = vmul.f32 %v346, %v324
        %v356 = vadd.f32 %v342, %v355
        %v357 = vmul.f32 %v352, %v320
        %v358 = vadd.f32 %v356, %v357
        %v359 = vlaneseq
        %v360 = vshrl.u32 %v359, 7
        %v361 = vsub.s32 2, %v360
        %v362 = vrot.slane %v317, %v361
        %v363 = vmul.f32 %v362, %v321
        %v364 = vadd.f32 %v354, %v363
        %v365 = vlaneseq
        %v366 = vshrl.u32 %v365, 7
        %v367 = vsub.s32 2, %v366
        %v368 = vrot.slane %v318, %v367
        %v369 = vmul.f32 %v368, %v325
        %v370 = vsub.f32 %v364, %v369
        %v371 = vmul.f32 %v362, %v325
        %v372 = vadd.f32 %v358, %v371
        %v373 = vmul.f32 %v368, %v321
        %v374 = vadd.f32 %v372, %v373
        %v375 = vlaneseq
        %v376 = vshrl.u32 %v375, 7
        %v377 = vsub.s32 3, %v376
        %v378 = vrot.slane %v317, %v377
        %v379 = vmul.f32 %v378, %v322
        %v380 = vadd.f32 %v370, %v379
        %v381 = vlaneseq
        %v382 = vshrl.u32 %v381, 7
        %v383 = vsub.s32 3, %v382
        %v384 = vrot.slane %v318, %v383
        %v385 = vmul.f32 %v384, %v326
        %v386 = vsub.f32 %v380, %v385
        %v387 = vmul.f32 %v378, %v326
        %v388 = vadd.f32 %v374, %v387
        %v389 = vmul.f32 %v384, %v322
        %v390 = vadd.f32 %v388, %v389
        %vm391 = vcmask 584704
        %392 = vst.msk [vmem:[%s309] sm:$0xf] %vm391, %v386
        %393 = vst.msk [vmem:[%s316] sm:$0xf] %vm391, %v390
        %s394 = sand.u32 %s132, 1
        %s395 = scalar_lea.sflag [#allocation4], %s394
        %s396 = sand.u32 %s132, 1
        %s397 = smul.addr %s396, 4
        %s398 = scalar_lea.vmem [#allocation10], %s397
        %s399 = sand.u32 %s158, 1
        %s400 = scalar_lea.sflag [#allocation12], %s399
        %s401 = sand.u32 %s158, 1
        %s402 = smul.addr %s401, 4
        %s403 = scalar_lea.vmem [#allocation11], %s402
        // Predicated region
        $region53: #{tpu_custom_call.1} parent=35 // pred_check
          %p404 = pneg %p142
        $region54: #{tpu_custom_call.1} parent=35 // pred_check_branch
          %406 = sbr.rel (%p404) target = $region56
        $region55: #{tpu_custom_call.1} parent=35 // pred_region
          %s408 = ssub.s32 64, 64
          %409 = vsyncadd %s395, %s408
          %s410 = smul.addr %s30, 64
          %s411 = scalar_lea.hbm %s4, %s410
          %s413 = sshll.u32 %s398, 4
          %s414 = int_to_ptr.vmem [resolvable:$true] %s413
          %416 = dma.vmem_to_hbm [thread:$0]  %s414, 64, %s411, %s395
        $region56: #{tpu_custom_call.1} parent=35 // pred_fallthru
          _
        // Predicated region
        $region57: #{tpu_custom_call.1} parent=35 // pred_check
          %p417 = pneg %p168
        $region58: #{tpu_custom_call.1} parent=35 // pred_check_branch
          %419 = sbr.rel (%p417) target = $region60
        $region59: #{tpu_custom_call.1} parent=35 // pred_region
          %s421 = ssub.s32 64, 64
          %422 = vsyncadd %s400, %s421
          %s423 = smul.addr %s30, 64
          %s424 = scalar_lea.hbm %s5, %s423
          %s426 = sshll.u32 %s403, 4
          %s427 = int_to_ptr.vmem [resolvable:$true] %s426
          %429 = dma.vmem_to_hbm [thread:$0]  %s427, 64, %s424, %s400
        $region60: #{tpu_custom_call.1} parent=35 // pred_fallthru
          _
      $region36: #{tpu_custom_call.1} parent=5 // pred_fallthru
        _
      %p430 = scmp.le.s32.totalorder 2, %s25
      // Predicated region
      $region61: #{tpu_custom_call.1} parent=5 // pred_check
        %p431 = pneg %p430
      $region62: #{tpu_custom_call.1} parent=5 // pred_check_branch
        %433 = sbr.rel (%p431) target = $region64
      $region63: #{tpu_custom_call.1} parent=5 // pred_region
        %s434 = ssub.s32 %s25, 2
        // Predicated region
        $region65: #{tpu_custom_call.1} parent=63 // pred_check
          %p435 = pneg %p148
        $region66: #{tpu_custom_call.1} parent=63 // pred_check_branch
          %437 = sbr.rel (%p435) target = $region68
        $region67: #{tpu_custom_call.1} parent=63 // pred_region
          %s438 = sand.u32 %s133, 1
          %s439 = scalar_lea.sflag [#allocation4], %s438
          %s440 = sand.u32 %s133, 1
          %s441 = smul.addr %s440, 4
          %s442 = scalar_lea.vmem [#allocation10], %s441
          %443 = dma.done %s439, 64
        $region68: #{tpu_custom_call.1} parent=63 // pred_fallthru
          _
        // Predicated region
        $region69: #{tpu_custom_call.1} parent=63 // pred_check
          %p444 = pneg %p174
        $region70: #{tpu_custom_call.1} parent=63 // pred_check_branch
          %446 = sbr.rel (%p444) target = $region72
        $region71: #{tpu_custom_call.1} parent=63 // pred_region
          %s447 = sand.u32 %s159, 1
          %s448 = scalar_lea.sflag [#allocation12], %s447
          %s449 = sand.u32 %s159, 1
          %s450 = smul.addr %s449, 4
          %s451 = scalar_lea.vmem [#allocation11], %s450
          %452 = dma.done %s448, 64
        $region72: #{tpu_custom_call.1} parent=63 // pred_fallthru
          _
      $region64: #{tpu_custom_call.1} parent=5 // pred_fallthru
        _
    $region6: #{tpu_custom_call.1} parent=1 // loop_footer
      %s29 = sadd.s32 1, %s25
    $region7: #{tpu_custom_call.1} parent=1 // loop_footer_branch
      %24 = sbr.rel target = $region3
    $region8: #{tpu_custom_call.1} parent=1 // loop_exit
      _
    %453 = vsyncpa [#allocation3], 1
    %s454 = scalar_lea.sflag [#allocation3], 1
    %455 = vsyncpa %s454, 1
    %456 = vsyncpa [#allocation6], 1
    %s457 = scalar_lea.sflag [#allocation6], 1
    %458 = vsyncpa %s457, 1
    %459 = vsyncpa [#allocation9], 1
    %460 = vsyncpa [#allocation4], 1
    %s461 = scalar_lea.sflag [#allocation4], 1
    %462 = vsyncpa %s461, 1
    %463 = vsyncpa [#allocation12], 1
    %s464 = scalar_lea.sflag [#allocation12], 1
    %465 = vsyncpa %s464, 1

</llo_original>
